<compile_context>
chip_gen: v5e
topology: v5e:2x2
jax: 0.10.0
libtpu: 0.0.40
codegen_flags: <defaults>
</compile_context>

<pallas_src>
import functools

import jax
import jax.numpy as jnp
from jax import lax
from jax.experimental import pallas as pl
from jax.experimental.pallas import tpu as pltpu


def _node_apply_kernel(x_ref, w_ref, b_ref, o_ref):
    # x_ref: [TILE_N, in_pad]   (current row tile, VMEM)
    # w_ref: [out_pad, in_pad]  (PyTorch layout, VMEM-resident across tiles)
    # b_ref: [1, out_pad]
    # o_ref: [TILE_N, out_pad]
    x = x_ref[...]
    w = w_ref[...]
    # x @ w.T on the MXU: contract dim 1 of x with dim 1 of w (no wrapper transpose).
    h = lax.dot_general(
        x, w,
        dimension_numbers=(((1,), (1,)), ((), ())),
        preferred_element_type=jnp.float32,
    )                                   # [TILE_N, out_pad], f32 accumulation
    h = h + b_ref[...]                  # broadcast bias over rows (VPU)
    o_ref[...] = jnp.maximum(h, 0.0).astype(o_ref.dtype)   # activation = relu


def _round_up(x, m):
    return ((x + m - 1) // m) * m


def _choose_tile_n(n_pad, in_pad, out_pad, dtype_bytes=4,
                   vmem_budget_bytes=20 * 1024 * 1024):
    """Largest row tile whose double-buffered x/out tiles + resident W/b fit VMEM."""
    resident = in_pad * out_pad * dtype_bytes + out_pad * dtype_bytes
    per_row = 2 * (in_pad + out_pad) * dtype_bytes      # 2 bufs for x + out each
    max_rows = max((vmem_budget_bytes - resident) // per_row, 8)
    tile = min(2048, int(max_rows), n_pad)
    tile = max(8, (tile // 8) * 8)                      # sublane-aligned
    return tile


@functools.partial(jax.jit, static_argnames=())
def node_apply(x, weight, bias):
    """Pallas equivalent of NodeApplyModule.forward on node.data['h'].

    x:      [N, in_feats]          float32 node features
    weight: [out_feats, in_feats]  (PyTorch nn.Linear layout, NOT transposed)
    bias:   [out_feats]
    returns [N, out_feats] = relu(x @ weight.T + bias)
    """
    n, in_feats = x.shape
    out_feats = weight.shape[0]

    # --- pad feature dims to 128 lanes, node dim to a tile multiple ---------
    in_pad = _round_up(in_feats, 128)
    out_pad = _round_up(out_feats, 128)
    n8 = _round_up(n, 8)
    tile_n = _choose_tile_n(n8, in_pad, out_pad)
    n_pad = _round_up(n, tile_n)

    x_p = jnp.pad(x, ((0, n_pad - n), (0, in_pad - in_feats)))
    w_p = jnp.pad(weight, ((0, out_pad - out_feats), (0, in_pad - in_feats)))
    b_p = jnp.pad(bias, (0, out_pad - out_feats)).reshape(1, out_pad)

    grid = (pl.cdiv(n_pad, tile_n),)

    cost = pl.CostEstimate(
        flops=2 * n * in_feats * out_feats,
        transcendentals=0,
        bytes_accessed=4 * (n * in_feats + in_feats * out_feats
                            + out_feats + n * out_feats),
    )

    out_p = pl.pallas_call(
        _node_apply_kernel,
        out_shape=jax.ShapeDtypeStruct((n_pad, out_pad), x.dtype),
        grid=grid,
        in_specs=[
            # row tile of x: streamed / double-buffered per grid step
            pl.BlockSpec((tile_n, in_pad), lambda i: (i, 0)),
            # weight: same block every step -> stays resident in VMEM
            pl.BlockSpec((out_pad, in_pad), lambda i: (0, 0)),
            # bias: resident
            pl.BlockSpec((1, out_pad), lambda i: (0, 0)),
        ],
        out_specs=pl.BlockSpec((tile_n, out_pad), lambda i: (i, 0)),
        compiler_params=pltpu.CompilerParams(
            # independent row tiles: shardable across v7x's 2 TensorCores
            dimension_semantics=("parallel",),
            # raise scoped VMEM above the v5e 16 MiB default; safe on all gens
            vmem_limit_bytes=32 * 1024 * 1024,
        ),
        cost_estimate=cost,
    )(x_p, w_p, b_p)

    # drop padded rows / feature columns
    return out_p[:n, :out_feats]


def node_apply_ref(x, weight, bias):
    # Pure-JAX reference for correctness checking.
    return jnp.maximum(x @ weight.T + bias, 0.0)


if __name__ == "__main__":
    key = jax.random.PRNGKey(0)
    k_x, k_w, k_b = jax.random.split(key, 3)

    N = 8            # number of graph nodes
    IN_FEATS = 32
    OUT_FEATS = 64

    x = jax.random.normal(k_x, (N, IN_FEATS), dtype=jnp.float32)
    # Deterministic parameter init (synthetic, like nn.Linear's uniform init).
    bound = 1.0 / jnp.sqrt(IN_FEATS)
    weight = jax.random.uniform(k_w, (OUT_FEATS, IN_FEATS),
                                minval=-bound, maxval=bound, dtype=jnp.float32)
    bias = jax.random.uniform(k_b, (OUT_FEATS,),
                              minval=-bound, maxval=bound, dtype=jnp.float32)

    out = node_apply(x, weight, bias)
    out = jax.block_until_ready(out)

    ref = node_apply_ref(x, weight, bias)
    assert out.shape == (N, OUT_FEATS)
    assert jnp.allclose(out, ref, atol=1e-5, rtol=1e-5)

    # TODO(synk): the DGL node-dict plumbing (returning {'h': h}) has no Pallas
    # equivalent; only the linear+activation math is implemented here.
    print("KERNEL_OK")
</pallas_src>

<mosaic_0001>
module attributes {stable_mosaic.version = 11 : i64} {
  func.func @_node_apply_kernel(%arg0: i32, %arg1: memref<8x128xf32, #tpu.memory_space<vmem>>, %arg2: memref<128x128xf32, #tpu.memory_space<vmem>>, %arg3: memref<1x128xf32, #tpu.memory_space<vmem>>, %arg4: memref<8x128xf32, #tpu.memory_space<vmem>>) attributes {dimension_semantics = [#tpu.dimension_semantics<parallel>], iteration_bounds = array<i64: 1>, scalar_prefetch = 0 : i64, scratch_operands = 0 : i64, tpu.core_type = #tpu.core_type<tc>, window_params = [{transform_indices = @transform_0, window_bounds = array<i64: 8, 128>}, {pipeline_mode = #tpu.pipeline_mode<synchronous>, transform_indices = @transform_1, window_bounds = array<i64: 128, 128>}, {pipeline_mode = #tpu.pipeline_mode<synchronous>, transform_indices = @transform_2, window_bounds = array<i64: 1, 128>}, {transform_indices = @transform_3, window_bounds = array<i64: 8, 128>}]} {
    %c0 = arith.constant 0 : index
    %c0_0 = arith.constant 0 : index
    %0 = vector.load %arg1[%c0, %c0_0] : memref<8x128xf32, #tpu.memory_space<vmem>>, vector<8x128xf32>
    %c0_1 = arith.constant 0 : index
    %c0_2 = arith.constant 0 : index
    %1 = vector.load %arg2[%c0_1, %c0_2] : memref<128x128xf32, #tpu.memory_space<vmem>>, vector<128x128xf32>
    %cst = arith.constant dense<0.000000e+00> : vector<8x128xf32>
    %2 = tpu.matmul %0, %1, %cst {dimension_numbers = #tpu.dot_dimension_numbers<[1], [1], [0], [0], [0, 0, 1, 0], [], []>} : vector<8x128xf32>, vector<128x128xf32>, vector<8x128xf32> -> vector<8x128xf32>
    %c0_3 = arith.constant 0 : index
    %c0_4 = arith.constant 0 : index
    %3 = vector.load %arg3[%c0_3, %c0_4] : memref<1x128xf32, #tpu.memory_space<vmem>>, vector<1x128xf32>
    %4 = vector.broadcast %3 : vector<1x128xf32> to vector<8x128xf32>
    %5 = arith.addf %2, %4 : vector<8x128xf32>
    %cst_5 = arith.constant 0.000000e+00 : f32
    %6 = vector.broadcast %cst_5 : f32 to vector<8x128xf32>
    %7 = arith.maximumf %5, %6 : vector<8x128xf32>
    %c0_6 = arith.constant 0 : index
    %c0_7 = arith.constant 0 : index
    %8 = vector.load %arg4[%c0_6, %c0_7] : memref<8x128xf32, #tpu.memory_space<vmem>>, vector<8x128xf32>
    tpu.vector_store %arg4[%c0_6, %c0_7], %7 {strides = array<i32>} : memref<8x128xf32, #tpu.memory_space<vmem>>, vector<8x128xf32>,
    return
  }
  func.func @transform_0(%arg0: i32) -> (i32, i32) {
    %c0_i32 = arith.constant 0 : i32
    %c0_i32_0 = arith.constant 0 : i32
    return %arg0, %c0_i32 : i32, i32
  }
  func.func @transform_1(%arg0: i32) -> (i32, i32) {
    %c0_i32 = arith.constant 0 : i32
    %c0_i32_0 = arith.constant 0 : i32
    %c0_i32_1 = arith.constant 0 : i32
    return %c0_i32, %c0_i32_0 : i32, i32
  }
  func.func @transform_2(%arg0: i32) -> (i32, i32) {
    %c0_i32 = arith.constant 0 : i32
    %c0_i32_0 = arith.constant 0 : i32
    %c0_i32_1 = arith.constant 0 : i32
    return %c0_i32, %c0_i32_0 : i32, i32
  }
  func.func @transform_3(%arg0: i32) -> (i32, i32) {
    %c0_i32 = arith.constant 0 : i32
    %c0_i32_0 = arith.constant 0 : i32
    return %arg0, %c0_i32 : i32, i32
  }
}

</mosaic_0001>

<llo_original>
// kernel: node_apply.1
$region0: #{node_apply.1}
  #allocation0 [shape = 'u32[]', space=smem, size = 0x4, offset = 0x4, fixed_abs, tag = 'smem constant byte address 0x4 - core index']
  #allocation1 [shape = 'u32[72,128]{1,0:T(1,128)}', space=vmem, size = 0x9000, scoped, tag = 'internal scratch']
  %s0 = inlined_call_operand.vmem [shape: f32[8,128], index: 0, kind: input, shape index: {}]
  %s1 = inlined_call_operand.vmem [shape: f32[128,128], index: 1, kind: input, shape index: {}]
  %s2 = inlined_call_operand.vmem [shape: f32[1,128], index: 2, kind: input, shape index: {}]
  %s3 = inlined_call_operand.hbm [shape: f32[8,128], index: 3, kind: output, shape index: {}]
  %s4 = sld [smem:[#allocation0]]
  $region22: #{node_apply.1} parent=0
    _
  %s6 = ssub.s32 1, %s4
  %s7 = scalar_select 0, %s6, %s4
  $region1: #{node_apply.1} parent=0
    #allocation2 [shape = 'u8[4096]{0}', space=vmem, size = 0x1000, scoped, tag = 'output window, operand 0, single buffered']
    #allocation3 [shape = 's32[1]{0}', space=sflag, size = 0x4, scoped, tag = 'scoped memory for node_apply.1']
    %8 = vsyncpa [#allocation3], 0
    // Predicated region
    $region2: #{node_apply.1} parent=1 // pred_check
      _
    $region3: #{node_apply.1} parent=1 // pred_check_branch
      %10 = sbr.rel (0) target = $region5
    $region4: #{node_apply.1} parent=1 // pred_region
      _
    $region5: #{node_apply.1} parent=1 // pred_fallthru
      _
    // Predicated region
    $region6: #{node_apply.1} parent=1 // pred_check
      _
    $region7: #{node_apply.1} parent=1 // pred_check_branch
      %12 = sbr.rel (0) target = $region9
    $region8: #{node_apply.1} parent=1 // pred_region
      _
    $region9: #{node_apply.1} parent=1 // pred_fallthru
      _
    // Predicated region
    $region10: #{node_apply.1} parent=1 // pred_check
      _
    $region11: #{node_apply.1} parent=1 // pred_check_branch
      %14 = sbr.rel (0) target = $region13
    $region12: #{node_apply.1} parent=1 // pred_region
      _
    $region13: #{node_apply.1} parent=1 // pred_fallthru
      _
    %v15 = vld [vmem:[%s0] sm:$0xff]
    %v16 = vld [vmem:[%s1] sm:$0xff]
    %v17 = vld [vmem:[%s1 + $0x8] sm:$0xff]
    %v18 = vld [vmem:[%s1 + $0x10] sm:$0xff]
    %v19 = vld [vmem:[%s1 + $0x18] sm:$0xff]
    %v20 = vld [vmem:[%s1 + $0x20] sm:$0xff]
    %v21 = vld [vmem:[%s1 + $0x28] sm:$0xff]
    %v22 = vld [vmem:[%s1 + $0x30] sm:$0xff]
    %v23 = vld [vmem:[%s1 + $0x38] sm:$0xff]
    %v24 = vld [vmem:[%s1 + $0x40] sm:$0xff]
    %v25 = vld [vmem:[%s1 + $0x48] sm:$0xff]
    %v26 = vld [vmem:[%s1 + $0x50] sm:$0xff]
    %v27 = vld [vmem:[%s1 + $0x58] sm:$0xff]
    %v28 = vld [vmem:[%s1 + $0x60] sm:$0xff]
    %v29 = vld [vmem:[%s1 + $0x68] sm:$0xff]
    %v30 = vld [vmem:[%s1 + $0x70] sm:$0xff]
    %v31 = vld [vmem:[%s1 + $0x78] sm:$0xff]
    %v32 = vld [vmem:[%s2] sm:$0x1]
    %v34 = vperm.slane %v32, 0
    %36 = vmatpush.xpose.msra.mxu0 %v31
    %37 = vmatpush.xpose.msra.mxu0 %v30
    %38 = vmatpush.xpose.msra.mxu0 %v29
    %39 = vmatpush.xpose.msra.mxu0 %v28
    %40 = vmatpush.xpose.msra.mxu0 %v27
    %41 = vmatpush.xpose.msra.mxu0 %v26
    %42 = vmatpush.xpose.msra.mxu0 %v25
    %43 = vmatpush.xpose.msra.mxu0 %v24
    %44 = vmatpush.xpose.msra.mxu0 %v23
    %45 = vmatpush.xpose.msra.mxu0 %v22
    %46 = vmatpush.xpose.msra.mxu0 %v21
    %47 = vmatpush.xpose.msra.mxu0 %v20
    %48 = vmatpush.xpose.msra.mxu0 %v19
    %49 = vmatpush.xpose.msra.mxu0 %v18
    %50 = vmatpush.xpose.msra.mxu0 %v17
    %51 = vmatpush.xpose.msra.mxu0 %v16
    %52 = vmatmul.f32.gmra.mxu0 %v15
    %v53 = vpop.f32.mrf.mxu0
    %v54 = vadd.f32 %v34, %v53
    %55 = vdwg.mxu0
    %v56 = vmax.f32 %v54, 0.0
    %57 = vst [vmem:[#allocation2] sm:$0xff] %v56
    // Predicated region
    $region14: #{node_apply.1} parent=1 // pred_check
      _
    $region15: #{node_apply.1} parent=1 // pred_check_branch
      %59 = sbr.rel (0) target = $region17
    $region16: #{node_apply.1} parent=1 // pred_region
      %61 = vsyncadd [#allocation3], 0
      %s63 = sshll.u32 [#allocation2], 4
      %s64 = int_to_ptr.vmem [resolvable:$true] %s63
      %s65 = sshll.u32 %s3, 4
      %s66 = int_to_ptr.hbm [resolvable:$true] %s65
      %68 = dma.vmem_to_hbm [thread:$0]  %s64, 128, %s66, [#allocation3]
    $region17: #{node_apply.1} parent=1 // pred_fallthru
      _
    // Predicated region
    $region18: #{node_apply.1} parent=1 // pred_check
      _
    $region19: #{node_apply.1} parent=1 // pred_check_branch
      %70 = sbr.rel (0) target = $region21
    $region20: #{node_apply.1} parent=1 // pred_region
      %72 = dma.done [#allocation3], 128
    $region21: #{node_apply.1} parent=1 // pred_fallthru
      _
    %73 = vsyncpa [#allocation3], 1

</llo_original>
